<compile_context>
chip_gen: v7x
topology: tpu7x:2x2x1
jax: 0.10.0
libtpu: 0.0.40
codegen_flags: <defaults>
</compile_context>

<pallas_src>
import functools

import jax
import jax.numpy as jnp
from jax import lax
from jax.experimental import pallas as pl
from jax.experimental.pallas import tpu as pltpu

_LANES = 128


def _round_up(v, m):
    return ((v + m - 1) // m) * m


def _pick_tile(n_rows, requested):
    # Sublane-aligned, at least 8, and capped at ~half the extent so the
    # "parallel" grid axis has >= 2 steps for v7x's two TensorCores.
    half = _round_up(max(pl.cdiv(n_rows, 2), 1), 8)
    return max(8, min(int(requested), half))


# ----------------------------------------------------------------------------
# Kernels
# ----------------------------------------------------------------------------
def _t2v_dense_kernel(x_ref, s_ref, b_ref, o_ref, *, dim: int, is_sin: bool):
    # x_ref: [TN, G] f32   (G = 128 // dim consecutive time values per slab row)
    # s_ref: [G, 128] f32  (block-diagonal selector with w folded in)
    # b_ref: [1, 128] f32  (bias tiled G times)
    # o_ref: [TN, 128] f32 (lane-dense output slab)
    y = jnp.dot(x_ref[...], s_ref[...],
                preferred_element_type=jnp.float32,
                precision=lax.Precision.HIGHEST) + b_ref[...]
    f = jnp.sin if is_sin else jnp.cos
    lane = lax.broadcasted_iota(jnp.int32, y.shape, 1)
    # Single full-width store: lane % dim == 0 is the linear ("time") feature,
    # everything else is periodic.
    o_ref[...] = jnp.where(lane % dim == 0, y, f(y))


def _t2v_rowtile_kernel(x_ref, w_ref, b_ref, o_ref, *, is_sin: bool):
    # Fallback when 128 % dim != 0.  x_ref: [TN,1], w/b: [1,dim], o_ref: [TN,dim].
    y = x_ref[...] * w_ref[...] + b_ref[...]
    f = jnp.sin if is_sin else jnp.cos
    col = lax.broadcasted_iota(jnp.int32, y.shape, 1)
    o_ref[...] = jnp.where(col == 0, y, f(y))


# ----------------------------------------------------------------------------
# Parameter prep (done once, not per call)
# ----------------------------------------------------------------------------
def prepare_time2vec_params(weight, bias):
    """nn.Linear(1, dim) params -> kernel-ready layout."""
    dim = int(weight.shape[0])
    w_row = weight.astype(jnp.float32).reshape(1, dim)
    b_row = bias.astype(jnp.float32).reshape(1, dim)
    if dim <= _LANES and _LANES % dim == 0:
        g = _LANES // dim
        # S[k, k*dim + j] = w[j]; zero elsewhere -> x_block @ S gives x*w in the
        # lane-dense layout directly.
        sel = jnp.kron(jnp.eye(g, dtype=jnp.float32), w_row)      # [G, 128]
        b_tiled = jnp.tile(b_row, (1, g))                         # [1, 128]
        return dict(mode="dense", dim=dim, g=g, sel=sel, b=b_tiled)
    return dict(mode="rowtile", dim=dim, w=w_row, b=b_row)


# ----------------------------------------------------------------------------
# Wrappers
# ----------------------------------------------------------------------------
def _time2vec_dense(x, params, is_sin, tile_rows):
    dim, g, sel, b = params["dim"], params["g"], params["sel"], params["b"]
    n = x.shape[0]
    n_slab = max(pl.cdiv(n, g), 8)      # floor keeps one full sublane tile for tiny N
    n_pad = n_slab * g
    if n_pad != n:
        # At most g-1 rows (plus the tiny-N floor); the trailing trim below only
        # materializes in this rare case.
        x = jnp.pad(x, ((0, n_pad - n), (0, 0)))
    xg = x.reshape(n_slab, g)           # free reshape when no pad was needed

    tn = _pick_tile(n_slab, tile_rows)
    grid = (pl.cdiv(n_slab, tn),)       # partial last block: Pallas masks the writes

    kernel = functools.partial(_t2v_dense_kernel, dim=dim, is_sin=is_sin)
    out_slab = pl.pallas_call(
        kernel,
        out_shape=jax.ShapeDtypeStruct((n_slab, _LANES), jnp.float32),
        grid_spec=pltpu.PrefetchScalarGridSpec(
            num_scalar_prefetch=0,
            grid=grid,
            in_specs=[
                pl.BlockSpec((tn, g), lambda i: (i, 0)),
                pl.BlockSpec((g, _LANES), lambda i: (0, 0)),
                pl.BlockSpec((1, _LANES), lambda i: (0, 0)),
            ],
            out_specs=pl.BlockSpec((tn, _LANES), lambda i: (i, 0)),
        ),
        compiler_params=pltpu.CompilerParams(
            dimension_semantics=("parallel",)),
        cost_estimate=pl.CostEstimate(
            flops=2 * n_slab * _LANES * (g + 1),
            transcendentals=n_slab * _LANES,
            bytes_accessed=4 * (n_slab * g + n_slab * _LANES + (g + 1) * _LANES)),
    )(xg, sel, b)

    out = out_slab.reshape(n_pad, dim)  # free: splits only the minor-most dim
    return out if n_pad == n else out[:n]


def _time2vec_rowtile(x, params, is_sin, tile_rows):
    dim, w, b = params["dim"], params["w"], params["b"]
    n = x.shape[0]
    tn = _pick_tile(n, tile_rows)
    grid = (pl.cdiv(n, tn),)
    kernel = functools.partial(_t2v_rowtile_kernel, is_sin=is_sin)
    return pl.pallas_call(
        kernel,
        out_shape=jax.ShapeDtypeStruct((n, dim), jnp.float32),
        grid_spec=pltpu.PrefetchScalarGridSpec(
            num_scalar_prefetch=0,
            grid=grid,
            in_specs=[
                pl.BlockSpec((tn, 1), lambda i: (i, 0)),
                pl.BlockSpec((1, dim), lambda i: (0, 0)),
                pl.BlockSpec((1, dim), lambda i: (0, 0)),
            ],
            out_specs=pl.BlockSpec((tn, dim), lambda i: (i, 0)),
        ),
        compiler_params=pltpu.CompilerParams(
            dimension_semantics=("parallel",)),
        cost_estimate=pl.CostEstimate(
            flops=2 * n * dim,
            transcendentals=n * dim,
            bytes_accessed=4 * (n + 2 * dim + n * dim)),
    )(x, w, b)


def time2vec(times_data, params, *, is_sin=True, tile_rows=4096):
    """times_data: [N, 1] -> [N, dim] f32 (the PackedSequence .data payload)."""
    x = times_data.astype(jnp.float32)
    if x.ndim == 1:
        x = x[:, None]
    if params["mode"] == "dense":
        return _time2vec_dense(x, params, is_sin, tile_rows)
    return _time2vec_rowtile(x, params, is_sin, tile_rows)


# ----------------------------------------------------------------------------
# Pure-JAX reference (elementwise form of Linear(1, dim): exact f32)
# ----------------------------------------------------------------------------
def time2vec_ref(times_data, weight, bias, *, is_sin=True):
    y = (times_data.astype(jnp.float32) * weight.astype(jnp.float32).reshape(1, -1)
         + bias.astype(jnp.float32)[None, :])
    f = jnp.sin if is_sin else jnp.cos
    return jnp.concatenate([y[:, :1], f(y[:, 1:])], axis=1)


if __name__ == "__main__":
    key = jax.random.PRNGKey(0)
    k_x, k_w, k_b, k_x2, k_w2, k_b2, k_x3 = jax.random.split(key, 7)

    # ---- lane-dense path: dim divides 128 ----
    N, DIM = 8, 32
    times_data = jax.random.uniform(k_x, (N, 1), dtype=jnp.float32) * 10.0
    weight = jax.random.normal(k_w, (DIM, 1), dtype=jnp.float32) * 0.5
    bias = jax.random.normal(k_b, (DIM,), dtype=jnp.float32) * 0.1
    params = prepare_time2vec_params(weight, bias)

    out = jax.block_until_ready(time2vec(times_data, params, is_sin=True))
    ref = time2vec_ref(times_data, weight, bias, is_sin=True)
    assert out.shape == (N, DIM)
    assert jnp.allclose(out, ref, atol=1e-4, rtol=1e-4), "mismatch vs reference (sin)"

    out_c = jax.block_until_ready(time2vec(times_data, params, is_sin=False))
    ref_c = time2vec_ref(times_data, weight, bias, is_sin=False)
    assert jnp.allclose(out_c, ref_c, atol=1e-4, rtol=1e-4), "mismatch vs reference (cos)"

    # Multi-step grid + N % 4 != 0 (partial last block + trailing trim).
    N2 = 777
    times2 = jax.random.uniform(k_x2, (N2, 1), dtype=jnp.float32) * 10.0
    out2 = jax.block_until_ready(time2vec(times2, params, is_sin=True, tile_rows=64))
    ref2 = time2vec_ref(times2, weight, bias, is_sin=True)
    assert out2.shape == (N2, DIM)
    assert jnp.allclose(out2, ref2, atol=1e-4, rtol=1e-4), "mismatch vs reference (tiled)"

    # ---- fallback path: 128 % dim != 0 ----
    N3, DIM3 = 13, 48
    times3 = jax.random.uniform(k_x3, (N3, 1), dtype=jnp.float32) * 10.0
    weight3 = jax.random.normal(k_w2, (DIM3, 1), dtype=jnp.float32) * 0.5
    bias3 = jax.random.normal(k_b2, (DIM3,), dtype=jnp.float32) * 0.1
    params3 = prepare_time2vec_params(weight3, bias3)
    out3 = jax.block_until_ready(time2vec(times3, params3, is_sin=True))
    ref3 = time2vec_ref(times3, weight3, bias3, is_sin=True)
    assert out3.shape == (N3, DIM3)
    assert jnp.allclose(out3, ref3, atol=1e-5, rtol=1e-5), "mismatch vs reference (fallback)"

    print("KERNEL_OK")
</pallas_src>

<mosaic_0001>
module attributes {stable_mosaic.version = 11 : i64} {
  func.func @_t2v_dense_kernel(%arg0: i32, %arg1: memref<8x4xf32, #tpu.memory_space<vmem>>, %arg2: memref<4x128xf32, #tpu.memory_space<vmem>>, %arg3: memref<1x128xf32, #tpu.memory_space<vmem>>, %arg4: memref<8x128xf32, #tpu.memory_space<vmem>>) attributes {dimension_semantics = [#tpu.dimension_semantics<parallel>], iteration_bounds = array<i64: 1>, scalar_prefetch = 0 : i64, scratch_operands = 0 : i64, tpu.core_type = #tpu.core_type<tc>, window_params = [{transform_indices = @transform_0, window_bounds = array<i64: 8, 4>}, {pipeline_mode = #tpu.pipeline_mode<synchronous>, transform_indices = @transform_1, window_bounds = array<i64: 4, 128>}, {pipeline_mode = #tpu.pipeline_mode<synchronous>, transform_indices = @transform_2, window_bounds = array<i64: 1, 128>}, {transform_indices = @transform_3, window_bounds = array<i64: 8, 128>}]} {
    %c0 = arith.constant 0 : index
    %c0_0 = arith.constant 0 : index
    %0 = vector.load %arg1[%c0, %c0_0] : memref<8x4xf32, #tpu.memory_space<vmem>>, vector<8x4xf32>
    %c0_1 = arith.constant 0 : index
    %c0_2 = arith.constant 0 : index
    %1 = vector.load %arg2[%c0_1, %c0_2] : memref<4x128xf32, #tpu.memory_space<vmem>>, vector<4x128xf32>
    %cst = arith.constant dense<0.000000e+00> : vector<8x128xf32>
    %2 = tpu.matmul %0, %1, %cst {dimension_numbers = #tpu.dot_dimension_numbers<[1], [0], [0], [1], [0, 0, 1, 1], [], []>, precision = #tpu.contract_precision<fp32>} : vector<8x4xf32>, vector<4x128xf32>, vector<8x128xf32> -> vector<8x128xf32>
    %c0_3 = arith.constant 0 : index
    %c0_4 = arith.constant 0 : index
    %3 = vector.load %arg3[%c0_3, %c0_4] : memref<1x128xf32, #tpu.memory_space<vmem>>, vector<1x128xf32>
    %4 = vector.broadcast %3 : vector<1x128xf32> to vector<8x128xf32>
    %5 = arith.addf %2, %4 : vector<8x128xf32>
    %6 = tpu.iota {dimensions = array<i32: 1>} : vector<8x128xi32>
    %c32_i32 = arith.constant 32 : i32
    %c0_i32 = arith.constant 0 : i32
    %7 = arith.cmpi eq, %c32_i32, %c0_i32 : i32
    %c1_i32 = arith.constant 1 : i32
    %8 = arith.select %7, %c1_i32, %c32_i32 : i32
    %9 = vector.broadcast %8 : i32 to vector<8x128xi32>
    %10 = arith.remsi %6, %9 : vector<8x128xi32>
    %c0_i32_5 = arith.constant 0 : i32
    %11 = vector.broadcast %c0_i32_5 : i32 to vector<8x128xi32>
    %12 = arith.cmpi ne, %10, %11 : vector<8x128xi32>
    %c0_i32_6 = arith.constant 0 : i32
    %13 = vector.broadcast %c0_i32_6 : i32 to vector<8x128xi32>
    %14 = arith.cmpi slt, %10, %13 : vector<8x128xi32>
    %c0_i32_7 = arith.constant 0 : i32
    %15 = arith.cmpi slt, %8, %c0_i32_7 : i32
    %16 = vector.broadcast %15 : i1 to vector<8x128xi1>
    %17 = vector.broadcast %16 : vector<8x128xi1> to vector<8x128xi1>
    %18 = arith.xori %14, %17 : vector<8x128xi1>
    %19 = arith.andi %18, %12 : vector<8x128xi1>
    %20 = vector.broadcast %8 : i32 to vector<8x128xi32>
    %21 = arith.addi %10, %20 : vector<8x128xi32>
    %22 = arith.select %19, %21, %10 : vector<8x128xi1>, vector<8x128xi32>
    %c0_i32_8 = arith.constant 0 : i32
    %23 = vector.broadcast %c0_i32_8 : i32 to vector<8x128xi32>
    %24 = arith.cmpi eq, %22, %23 : vector<8x128xi32>
    %25 = math.sin %5 : vector<8x128xf32>
    %26 = arith.select %24, %5, %25 : vector<8x128xi1>, vector<8x128xf32>
    %c0_9 = arith.constant 0 : index
    %c0_10 = arith.constant 0 : index
    %27 = vector.load %arg4[%c0_9, %c0_10] : memref<8x128xf32, #tpu.memory_space<vmem>>, vector<8x128xf32>
    tpu.vector_store %arg4[%c0_9, %c0_10], %26 {strides = array<i32>} : memref<8x128xf32, #tpu.memory_space<vmem>>, vector<8x128xf32>,
    return
  }
  func.func @transform_0(%arg0: i32) -> (i32, i32) {
    %c0_i32 = arith.constant 0 : i32
    %c0_i32_0 = arith.constant 0 : i32
    return %arg0, %c0_i32 : i32, i32
  }
  func.func @transform_1(%arg0: i32) -> (i32, i32) {
    %c0_i32 = arith.constant 0 : i32
    %c0_i32_0 = arith.constant 0 : i32
    %c0_i32_1 = arith.constant 0 : i32
    return %c0_i32, %c0_i32_0 : i32, i32
  }
  func.func @transform_2(%arg0: i32) -> (i32, i32) {
    %c0_i32 = arith.constant 0 : i32
    %c0_i32_0 = arith.constant 0 : i32
    %c0_i32_1 = arith.constant 0 : i32
    return %c0_i32, %c0_i32_0 : i32, i32
  }
  func.func @transform_3(%arg0: i32) -> (i32, i32) {
    %c0_i32 = arith.constant 0 : i32
    %c0_i32_0 = arith.constant 0 : i32
    return %arg0, %c0_i32 : i32, i32
  }
}

</mosaic_0001>

<llo_original>
// kernel: tpu_custom_call.1
$region0: #{tpu_custom_call.1}
  #allocation0 [shape = 'u32[]', space=smem, size = 0x4, offset = 0x4, fixed_abs, tag = 'smem constant byte address 0x4 - core index']
  #allocation1 [shape = 'u32[144,128]{1,0:T(1,128)}', space=vmem, size = 0x12000, scoped, tag = 'internal scratch']
  %s0 = inlined_call_operand.vmem [shape: f32[8,4], index: 0, kind: input, shape index: {}]
  %s1 = inlined_call_operand.vmem [shape: f32[4,128], index: 1, kind: input, shape index: {}]
  %s2 = inlined_call_operand.vmem [shape: f32[1,128], index: 2, kind: input, shape index: {}]
  %s3 = inlined_call_operand.hbm [shape: f32[8,128], index: 3, kind: output, shape index: {}]
  %s4 = sld [smem:[#allocation0]]
  $region22: #{tpu_custom_call.1} parent=0
    _
  %s6 = ssub.s32 1, %s4
  %s7 = scalar_select 0, %s6, %s4
  $region1: #{tpu_custom_call.1} parent=0
    #allocation2 [shape = 'u8[4096]{0}', space=vmem, size = 0x1000, scoped, tag = 'output window, operand 0, single buffered']
    #allocation3 [shape = 's32[1]{0}', space=sflag, size = 0x4, scoped, tag = 'scoped memory for tpu_custom_call.1']
    %8 = vsyncpa [#allocation3], 0
    // Predicated region
    $region2: #{tpu_custom_call.1} parent=1 // pred_check
      _
    $region3: #{tpu_custom_call.1} parent=1 // pred_check_branch
      %10 = sbr.rel (0) target = $region5
    $region4: #{tpu_custom_call.1} parent=1 // pred_region
      _
    $region5: #{tpu_custom_call.1} parent=1 // pred_fallthru
      _
    // Predicated region
    $region6: #{tpu_custom_call.1} parent=1 // pred_check
      _
    $region7: #{tpu_custom_call.1} parent=1 // pred_check_branch
      %12 = sbr.rel (0) target = $region9
    $region8: #{tpu_custom_call.1} parent=1 // pred_region
      _
    $region9: #{tpu_custom_call.1} parent=1 // pred_fallthru
      _
    // Predicated region
    $region10: #{tpu_custom_call.1} parent=1 // pred_check
      _
    $region11: #{tpu_custom_call.1} parent=1 // pred_check_branch
      %14 = sbr.rel (0) target = $region13
    $region12: #{tpu_custom_call.1} parent=1 // pred_region
      _
    $region13: #{tpu_custom_call.1} parent=1 // pred_fallthru
      _
    %v15 = vld [vmem:[%s0] sm:$0xff]
    %v16 = vld [vmem:[%s1] sm:$0xf]
    %v17 = vld [vmem:[%s2] sm:$0x1]
    %v19 = vlaneseq
    %v20 = vshrl.u32 %v19, 7
    %v21 = vsub.s32 0, %v20
    %v22 = vrot.slane %v17, %v21
    %vm24 = vcmask 31744
    %v26 = vsel %vm24, %v15, 0
    %vm28 = vcmask 1043456
    %v30 = vsel %vm28, %v16, 0
    %32 = vmatprep.subr.mxu0 0.0
    %v33 = vand.u32 %v30, 4294901760
    %34 = vmatpush1.msra.mxu0 %v33
    %35 = vmatprep.subr.mxu0 0.0
    %36 = vmatpush1.msra.mxu0 0.0
    %37 = vmatprep.subr.mxu0 0.0
    %38 = vmatpush1.msra.mxu0 0.0
    %39 = vmatprep.subr.mxu0 0.0
    %40 = vmatpush1.msra.mxu0 0.0
    %41 = vmatprep.subr.mxu0 0.0
    %42 = vmatpush1.msra.mxu0 0.0
    %43 = vmatprep.subr.mxu0 0.0
    %44 = vmatpush1.msra.mxu0 0.0
    %45 = vmatprep.subr.mxu0 0.0
    %46 = vmatpush1.msra.mxu0 0.0
    %47 = vmatprep.subr.mxu0 0.0
    %48 = vmatpush1.msra.mxu0 0.0
    %49 = vmatprep.subr.mxu0 0.0
    %50 = vmatpush1.msra.mxu0 0.0
    %51 = vmatprep.subr.mxu0 0.0
    %52 = vmatpush1.msra.mxu0 0.0
    %53 = vmatprep.subr.mxu0 0.0
    %54 = vmatpush1.msra.mxu0 0.0
    %55 = vmatprep.subr.mxu0 0.0
    %56 = vmatpush1.msra.mxu0 0.0
    %57 = vmatprep.subr.mxu0 0.0
    %58 = vmatpush1.msra.mxu0 0.0
    %59 = vmatprep.subr.mxu0 0.0
    %60 = vmatpush1.msra.mxu0 0.0
    %61 = vmatprep.subr.mxu0 0.0
    %62 = vmatpush1.msra.mxu0 0.0
    %63 = vmatprep.subr.mxu0 0.0
    %64 = vmatpush1.msra.mxu0 0.0
    %65 = vmatprep.subr.mxu0 0.0
    %66 = vmatpush1.msra.mxu0 0.0
    %67 = vmatprep.subr.mxu0 0.0
    %68 = vmatpush1.msra.mxu0 0.0
    %69 = vmatprep.subr.mxu0 0.0
    %70 = vmatpush1.msra.mxu0 0.0
    %71 = vmatprep.subr.mxu0 0.0
    %72 = vmatpush1.msra.mxu0 0.0
    %73 = vmatprep.subr.mxu0 0.0
    %74 = vmatpush1.msra.mxu0 0.0
    %75 = vmatprep.subr.mxu0 0.0
    %76 = vmatpush1.msra.mxu0 0.0
    %77 = vmatprep.subr.mxu0 0.0
    %78 = vmatpush1.msra.mxu0 0.0
    %79 = vmatprep.subr.mxu0 0.0
    %80 = vmatpush1.msra.mxu0 0.0
    %81 = vmatprep.subr.mxu0 0.0
    %82 = vmatpush1.msra.mxu0 0.0
    %83 = vmatprep.subr.mxu0 0.0
    %84 = vmatpush1.msra.mxu0 0.0
    %85 = vmatprep.subr.mxu0 0.0
    %86 = vmatpush1.msra.mxu0 0.0
    %87 = vmatprep.subr.mxu0 0.0
    %88 = vmatpush1.msra.mxu0 0.0
    %89 = vmatprep.subr.mxu0 0.0
    %90 = vmatpush1.msra.mxu0 0.0
    %91 = vmatprep.subr.mxu0 0.0
    %92 = vmatpush1.msra.mxu0 0.0
    %93 = vmatprep.subr.mxu0 0.0
    %94 = vmatpush1.msra.mxu0 0.0
    %95 = vmatprep.subr.mxu0 0.0
    %96 = vmatpush1.msra.mxu0 0.0
    %97 = vmatprep.mubr.f32.mxu0 0.0
    %v98 = vand.u32 %v26, 4294901760
    %v99 = vsub.f32 %v26, %v98
    %v100 = vand.u32 %v99, 4294901760
    %v101 = vsub.f32 %v99, %v100
    %v102 = vand.u32 %v101, 4294901760
    %103 = vmatmul.mubr.f32.gmra.mrb[0].mxu0 %v102
    %v104 = vpop.f32.mrb[0].mxu0
    %v105 = vadd.f32 %v22, %v104
    %v106 = vpop.f32.mrb[0].mxu0
    %107 = vdwg.mxu0
    %108 = vmatprep.subr.mxu0 0.0
    %v109 = vand.u32 %v30, 4294901760
    %v110 = vsub.f32 %v30, %v109
    %v111 = vand.u32 %v110, 4294901760
    %v112 = vsub.f32 %v110, %v111
    %v113 = vand.u32 %v112, 4294901760
    %114 = vmatpush1.msra.mxu0 %v113
    %115 = vmatprep.subr.mxu0 0.0
    %116 = vmatpush1.msra.mxu0 0.0
    %117 = vmatprep.subr.mxu0 0.0
    %118 = vmatpush1.msra.mxu0 0.0
    %119 = vmatprep.subr.mxu0 0.0
    %120 = vmatpush1.msra.mxu0 0.0
    %121 = vmatprep.subr.mxu0 0.0
    %122 = vmatpush1.msra.mxu0 0.0
    %123 = vmatprep.subr.mxu0 0.0
    %124 = vmatpush1.msra.mxu0 0.0
    %125 = vmatprep.subr.mxu0 0.0
    %126 = vmatpush1.msra.mxu0 0.0
    %127 = vmatprep.subr.mxu0 0.0
    %128 = vmatpush1.msra.mxu0 0.0
    %129 = vmatprep.subr.mxu0 0.0
    %130 = vmatpush1.msra.mxu0 0.0
    %131 = vmatprep.subr.mxu0 0.0
    %132 = vmatpush1.msra.mxu0 0.0
    %133 = vmatprep.subr.mxu0 0.0
    %134 = vmatpush1.msra.mxu0 0.0
    %135 = vmatprep.subr.mxu0 0.0
    %136 = vmatpush1.msra.mxu0 0.0
    %137 = vmatprep.subr.mxu0 0.0
    %138 = vmatpush1.msra.mxu0 0.0
    %139 = vmatprep.subr.mxu0 0.0
    %140 = vmatpush1.msra.mxu0 0.0
    %141 = vmatprep.subr.mxu0 0.0
    %142 = vmatpush1.msra.mxu0 0.0
    %143 = vmatprep.subr.mxu0 0.0
    %144 = vmatpush1.msra.mxu0 0.0
    %145 = vmatprep.subr.mxu0 0.0
    %146 = vmatpush1.msra.mxu0 0.0
    %147 = vmatprep.subr.mxu0 0.0
    %148 = vmatpush1.msra.mxu0 0.0
    %149 = vmatprep.subr.mxu0 0.0
    %150 = vmatpush1.msra.mxu0 0.0
    %151 = vmatprep.subr.mxu0 0.0
    %152 = vmatpush1.msra.mxu0 0.0
    %153 = vmatprep.subr.mxu0 0.0
    %154 = vmatpush1.msra.mxu0 0.0
    %155 = vmatprep.subr.mxu0 0.0
    %156 = vmatpush1.msra.mxu0 0.0
    %157 = vmatprep.subr.mxu0 0.0
    %158 = vmatpush1.msra.mxu0 0.0
    %159 = vmatprep.subr.mxu0 0.0
    %160 = vmatpush1.msra.mxu0 0.0
    %161 = vmatprep.subr.mxu0 0.0
    %162 = vmatpush1.msra.mxu0 0.0
    %163 = vmatprep.subr.mxu0 0.0
    %164 = vmatpush1.msra.mxu0 0.0
    %165 = vmatprep.subr.mxu0 0.0
    %166 = vmatpush1.msra.mxu0 0.0
    %167 = vmatprep.subr.mxu0 0.0
    %168 = vmatpush1.msra.mxu0 0.0
    %169 = vmatprep.subr.mxu0 0.0
    %170 = vmatpush1.msra.mxu0 0.0
    %171 = vmatprep.subr.mxu0 0.0
    %172 = vmatpush1.msra.mxu0 0.0
    %173 = vmatprep.subr.mxu0 0.0
    %174 = vmatpush1.msra.mxu0 0.0
    %175 = vmatprep.subr.mxu0 0.0
    %176 = vmatpush1.msra.mxu0 0.0
    %177 = vmatprep.mubr.f32.mxu0 0.0
    %v178 = vand.u32 %v26, 4294901760
    %179 = vmatmul.mubr.f32.gmra.mrb[0].mxu0 %v178
    %v180 = vpop.f32.mrb[0].mxu0
    %v181 = vadd.f32 %v105, %v180
    %v182 = vpop.f32.mrb[0].mxu0
    %183 = vdwg.mxu0
    %184 = vmatprep.subr.mxu0 0.0
    %v185 = vand.u32 %v30, 4294901760
    %v186 = vsub.f32 %v30, %v185
    %187 = vmatpush1.msra.mxu0 %v186
    %188 = vmatprep.subr.mxu0 0.0
    %189 = vmatpush1.msra.mxu0 0.0
    %190 = vmatprep.subr.mxu0 0.0
    %191 = vmatpush1.msra.mxu0 0.0
    %192 = vmatprep.subr.mxu0 0.0
    %193 = vmatpush1.msra.mxu0 0.0
    %194 = vmatprep.subr.mxu0 0.0
    %195 = vmatpush1.msra.mxu0 0.0
    %196 = vmatprep.subr.mxu0 0.0
    %197 = vmatpush1.msra.mxu0 0.0
    %198 = vmatprep.subr.mxu0 0.0
    %199 = vmatpush1.msra.mxu0 0.0
    %200 = vmatprep.subr.mxu0 0.0
    %201 = vmatpush1.msra.mxu0 0.0
    %202 = vmatprep.subr.mxu0 0.0
    %203 = vmatpush1.msra.mxu0 0.0
    %204 = vmatprep.subr.mxu0 0.0
    %205 = vmatpush1.msra.mxu0 0.0
    %206 = vmatprep.subr.mxu0 0.0
    %207 = vmatpush1.msra.mxu0 0.0
    %208 = vmatprep.subr.mxu0 0.0
    %209 = vmatpush1.msra.mxu0 0.0
    %210 = vmatprep.subr.mxu0 0.0
    %211 = vmatpush1.msra.mxu0 0.0
    %212 = vmatprep.subr.mxu0 0.0
    %213 = vmatpush1.msra.mxu0 0.0
    %214 = vmatprep.subr.mxu0 0.0
    %215 = vmatpush1.msra.mxu0 0.0
    %216 = vmatprep.subr.mxu0 0.0
    %217 = vmatpush1.msra.mxu0 0.0
    %218 = vmatprep.subr.mxu0 0.0
    %219 = vmatpush1.msra.mxu0 0.0
    %220 = vmatprep.subr.mxu0 0.0
    %221 = vmatpush1.msra.mxu0 0.0
    %222 = vmatprep.subr.mxu0 0.0
    %223 = vmatpush1.msra.mxu0 0.0
    %224 = vmatprep.subr.mxu0 0.0
    %225 = vmatpush1.msra.mxu0 0.0
    %226 = vmatprep.subr.mxu0 0.0
    %227 = vmatpush1.msra.mxu0 0.0
    %228 = vmatprep.subr.mxu0 0.0
    %229 = vmatpush1.msra.mxu0 0.0
    %230 = vmatprep.subr.mxu0 0.0
    %231 = vmatpush1.msra.mxu0 0.0
    %232 = vmatprep.subr.mxu0 0.0
    %233 = vmatpush1.msra.mxu0 0.0
    %234 = vmatprep.subr.mxu0 0.0
    %235 = vmatpush1.msra.mxu0 0.0
    %236 = vmatprep.subr.mxu0 0.0
    %237 = vmatpush1.msra.mxu0 0.0
    %238 = vmatprep.subr.mxu0 0.0
    %239 = vmatpush1.msra.mxu0 0.0
    %240 = vmatprep.subr.mxu0 0.0
    %241 = vmatpush1.msra.mxu0 0.0
    %242 = vmatprep.subr.mxu0 0.0
    %243 = vmatpush1.msra.mxu0 0.0
    %244 = vmatprep.subr.mxu0 0.0
    %245 = vmatpush1.msra.mxu0 0.0
    %246 = vmatprep.subr.mxu0 0.0
    %247 = vmatpush1.msra.mxu0 0.0
    %248 = vmatprep.subr.mxu0 0.0
    %249 = vmatpush1.msra.mxu0 0.0
    %250 = vmatprep.mubr.f32.mxu0 0.0
    %v251 = vand.u32 %v26, 4294901760
    %v252 = vsub.f32 %v26, %v251
    %253 = vmatmul.mubr.f32.gmra.mrb[0].mxu0 %v252
    %v254 = vpop.f32.mrb[0].mxu0
    %v255 = vadd.f32 %v181, %v254
    %v256 = vpop.f32.mrb[0].mxu0
    %257 = vdwg.mxu0
    %258 = vmatprep.subr.mxu0 0.0
    %v259 = vand.u32 %v30, 4294901760
    %260 = vmatpush1.msra.mxu0 %v259
    %261 = vmatprep.subr.mxu0 0.0
    %262 = vmatpush1.msra.mxu0 0.0
    %263 = vmatprep.subr.mxu0 0.0
    %264 = vmatpush1.msra.mxu0 0.0
    %265 = vmatprep.subr.mxu0 0.0
    %266 = vmatpush1.msra.mxu0 0.0
    %267 = vmatprep.subr.mxu0 0.0
    %268 = vmatpush1.msra.mxu0 0.0
    %269 = vmatprep.subr.mxu0 0.0
    %270 = vmatpush1.msra.mxu0 0.0
    %271 = vmatprep.subr.mxu0 0.0
    %272 = vmatpush1.msra.mxu0 0.0
    %273 = vmatprep.subr.mxu0 0.0
    %274 = vmatpush1.msra.mxu0 0.0
    %275 = vmatprep.subr.mxu0 0.0
    %276 = vmatpush1.msra.mxu0 0.0
    %277 = vmatprep.subr.mxu0 0.0
    %278 = vmatpush1.msra.mxu0 0.0
    %279 = vmatprep.subr.mxu0 0.0
    %280 = vmatpush1.msra.mxu0 0.0
    %281 = vmatprep.subr.mxu0 0.0
    %282 = vmatpush1.msra.mxu0 0.0
    %283 = vmatprep.subr.mxu0 0.0
    %284 = vmatpush1.msra.mxu0 0.0
    %285 = vmatprep.subr.mxu0 0.0
    %286 = vmatpush1.msra.mxu0 0.0
    %287 = vmatprep.subr.mxu0 0.0
    %288 = vmatpush1.msra.mxu0 0.0
    %289 = vmatprep.subr.mxu0 0.0
    %290 = vmatpush1.msra.mxu0 0.0
    %291 = vmatprep.subr.mxu0 0.0
    %292 = vmatpush1.msra.mxu0 0.0
    %293 = vmatprep.subr.mxu0 0.0
    %294 = vmatpush1.msra.mxu0 0.0
    %295 = vmatprep.subr.mxu0 0.0
    %296 = vmatpush1.msra.mxu0 0.0
    %297 = vmatprep.subr.mxu0 0.0
    %298 = vmatpush1.msra.mxu0 0.0
    %299 = vmatprep.subr.mxu0 0.0
    %300 = vmatpush1.msra.mxu0 0.0
    %301 = vmatprep.subr.mxu0 0.0
    %302 = vmatpush1.msra.mxu0 0.0
    %303 = vmatprep.subr.mxu0 0.0
    %304 = vmatpush1.msra.mxu0 0.0
    %305 = vmatprep.subr.mxu0 0.0
    %306 = vmatpush1.msra.mxu0 0.0
    %307 = vmatprep.subr.mxu0 0.0
    %308 = vmatpush1.msra.mxu0 0.0
    %309 = vmatprep.subr.mxu0 0.0
    %310 = vmatpush1.msra.mxu0 0.0
    %311 = vmatprep.subr.mxu0 0.0
    %312 = vmatpush1.msra.mxu0 0.0
    %313 = vmatprep.subr.mxu0 0.0
    %314 = vmatpush1.msra.mxu0 0.0
    %315 = vmatprep.subr.mxu0 0.0
    %316 = vmatpush1.msra.mxu0 0.0
    %317 = vmatprep.subr.mxu0 0.0
    %318 = vmatpush1.msra.mxu0 0.0
    %319 = vmatprep.subr.mxu0 0.0
    %320 = vmatpush1.msra.mxu0 0.0
    %321 = vmatprep.subr.mxu0 0.0
    %322 = vmatpush1.msra.mxu0 0.0
    %323 = vmatprep.mubr.f32.mxu0 0.0
    %v324 = vand.u32 %v26, 4294901760
    %v325 = vsub.f32 %v26, %v324
    %v326 = vand.u32 %v325, 4294901760
    %327 = vmatmul.mubr.f32.gmra.mrb[0].mxu0 %v326
    %v328 = vpop.f32.mrb[0].mxu0
    %v329 = vadd.f32 %v255, %v328
    %v330 = vpop.f32.mrb[0].mxu0
    %331 = vdwg.mxu0
    %332 = vmatprep.subr.mxu0 0.0
    %v333 = vand.u32 %v30, 4294901760
    %v334 = vsub.f32 %v30, %v333
    %v335 = vand.u32 %v334, 4294901760
    %336 = vmatpush1.msra.mxu0 %v335
    %337 = vmatprep.subr.mxu0 0.0
    %338 = vmatpush1.msra.mxu0 0.0
    %339 = vmatprep.subr.mxu0 0.0
    %340 = vmatpush1.msra.mxu0 0.0
    %341 = vmatprep.subr.mxu0 0.0
    %342 = vmatpush1.msra.mxu0 0.0
    %343 = vmatprep.subr.mxu0 0.0
    %344 = vmatpush1.msra.mxu0 0.0
    %345 = vmatprep.subr.mxu0 0.0
    %346 = vmatpush1.msra.mxu0 0.0
    %347 = vmatprep.subr.mxu0 0.0
    %348 = vmatpush1.msra.mxu0 0.0
    %349 = vmatprep.subr.mxu0 0.0
    %350 = vmatpush1.msra.mxu0 0.0
    %351 = vmatprep.subr.mxu0 0.0
    %352 = vmatpush1.msra.mxu0 0.0
    %353 = vmatprep.subr.mxu0 0.0
    %354 = vmatpush1.msra.mxu0 0.0
    %355 = vmatprep.subr.mxu0 0.0
    %356 = vmatpush1.msra.mxu0 0.0
    %357 = vmatprep.subr.mxu0 0.0
    %358 = vmatpush1.msra.mxu0 0.0
    %359 = vmatprep.subr.mxu0 0.0
    %360 = vmatpush1.msra.mxu0 0.0
    %361 = vmatprep.subr.mxu0 0.0
    %362 = vmatpush1.msra.mxu0 0.0
    %363 = vmatprep.subr.mxu0 0.0
    %364 = vmatpush1.msra.mxu0 0.0
    %365 = vmatprep.subr.mxu0 0.0
    %366 = vmatpush1.msra.mxu0 0.0
    %367 = vmatprep.subr.mxu0 0.0
    %368 = vmatpush1.msra.mxu0 0.0
    %369 = vmatprep.subr.mxu0 0.0
    %370 = vmatpush1.msra.mxu0 0.0
    %371 = vmatprep.subr.mxu0 0.0
    %372 = vmatpush1.msra.mxu0 0.0
    %373 = vmatprep.subr.mxu0 0.0
    %374 = vmatpush1.msra.mxu0 0.0
    %375 = vmatprep.subr.mxu0 0.0
    %376 = vmatpush1.msra.mxu0 0.0
    %377 = vmatprep.subr.mxu0 0.0
    %378 = vmatpush1.msra.mxu0 0.0
    %379 = vmatprep.subr.mxu0 0.0
    %380 = vmatpush1.msra.mxu0 0.0
    %381 = vmatprep.subr.mxu0 0.0
    %382 = vmatpush1.msra.mxu0 0.0
    %383 = vmatprep.subr.mxu0 0.0
    %384 = vmatpush1.msra.mxu0 0.0
    %385 = vmatprep.subr.mxu0 0.0
    %386 = vmatpush1.msra.mxu0 0.0
    %387 = vmatprep.subr.mxu0 0.0
    %388 = vmatpush1.msra.mxu0 0.0
    %389 = vmatprep.subr.mxu0 0.0
    %390 = vmatpush1.msra.mxu0 0.0
    %391 = vmatprep.subr.mxu0 0.0
    %392 = vmatpush1.msra.mxu0 0.0
    %393 = vmatprep.subr.mxu0 0.0
    %394 = vmatpush1.msra.mxu0 0.0
    %395 = vmatprep.subr.mxu0 0.0
    %396 = vmatpush1.msra.mxu0 0.0
    %397 = vmatprep.subr.mxu0 0.0
    %398 = vmatpush1.msra.mxu0 0.0
    %399 = vmatprep.mubr.f32.mxu0 0.0
    %v400 = vand.u32 %v26, 4294901760
    %401 = vmatmul.mubr.f32.gmra.mrb[0].mxu0 %v400
    %v402 = vpop.f32.mrb[0].mxu0
    %v403 = vadd.f32 %v329, %v402
    %v404 = vpop.f32.mrb[0].mxu0
    %405 = vdwg.mxu0
    %406 = vmatprep.subr.mxu0 0.0
    %v407 = vand.u32 %v30, 4294901760
    %408 = vmatpush1.msra.mxu0 %v407
    %409 = vmatprep.subr.mxu0 0.0
    %410 = vmatpush1.msra.mxu0 0.0
    %411 = vmatprep.subr.mxu0 0.0
    %412 = vmatpush1.msra.mxu0 0.0
    %413 = vmatprep.subr.mxu0 0.0
    %414 = vmatpush1.msra.mxu0 0.0
    %415 = vmatprep.subr.mxu0 0.0
    %416 = vmatpush1.msra.mxu0 0.0
    %417 = vmatprep.subr.mxu0 0.0
    %418 = vmatpush1.msra.mxu0 0.0
    %419 = vmatprep.subr.mxu0 0.0
    %420 = vmatpush1.msra.mxu0 0.0
    %421 = vmatprep.subr.mxu0 0.0
    %422 = vmatpush1.msra.mxu0 0.0
    %423 = vmatprep.subr.mxu0 0.0
    %424 = vmatpush1.msra.mxu0 0.0
    %425 = vmatprep.subr.mxu0 0.0
    %426 = vmatpush1.msra.mxu0 0.0
    %427 = vmatprep.subr.mxu0 0.0
    %428 = vmatpush1.msra.mxu0 0.0
    %429 = vmatprep.subr.mxu0 0.0
    %430 = vmatpush1.msra.mxu0 0.0
    %431 = vmatprep.subr.mxu0 0.0
    %432 = vmatpush1.msra.mxu0 0.0
    %433 = vmatprep.subr.mxu0 0.0
    %434 = vmatpush1.msra.mxu0 0.0
    %435 = vmatprep.subr.mxu0 0.0
    %436 = vmatpush1.msra.mxu0 0.0
    %437 = vmatprep.subr.mxu0 0.0
    %438 = vmatpush1.msra.mxu0 0.0
    %439 = vmatprep.subr.mxu0 0.0
    %440 = vmatpush1.msra.mxu0 0.0
    %441 = vmatprep.subr.mxu0 0.0
    %442 = vmatpush1.msra.mxu0 0.0
    %443 = vmatprep.subr.mxu0 0.0
    %444 = vmatpush1.msra.mxu0 0.0
    %445 = vmatprep.subr.mxu0 0.0
    %446 = vmatpush1.msra.mxu0 0.0
    %447 = vmatprep.subr.mxu0 0.0
    %448 = vmatpush1.msra.mxu0 0.0
    %449 = vmatprep.subr.mxu0 0.0
    %450 = vmatpush1.msra.mxu0 0.0
    %451 = vmatprep.subr.mxu0 0.0
    %452 = vmatpush1.msra.mxu0 0.0
    %453 = vmatprep.subr.mxu0 0.0
    %454 = vmatpush1.msra.mxu0 0.0
    %455 = vmatprep.subr.mxu0 0.0
    %456 = vmatpush1.msra.mxu0 0.0
    %457 = vmatprep.subr.mxu0 0.0
    %458 = vmatpush1.msra.mxu0 0.0
    %459 = vmatprep.subr.mxu0 0.0
    %460 = vmatpush1.msra.mxu0 0.0
    %461 = vmatprep.subr.mxu0 0.0
    %462 = vmatpush1.msra.mxu0 0.0
    %463 = vmatprep.subr.mxu0 0.0
    %464 = vmatpush1.msra.mxu0 0.0
    %465 = vmatprep.subr.mxu0 0.0
    %466 = vmatpush1.msra.mxu0 0.0
    %467 = vmatprep.subr.mxu0 0.0
    %468 = vmatpush1.msra.mxu0 0.0
    %469 = vmatprep.subr.mxu0 0.0
    %470 = vmatpush1.msra.mxu0 0.0
    %471 = vmatprep.mubr.f32.mxu0 0.0
    %v472 = vand.u32 %v26, 4294901760
    %473 = vmatmul.mubr.f32.gmra.mrb[0].mxu0 %v472
    %v474 = vpop.f32.mrb[0].mxu0
    %v475 = vadd.f32 %v403, %v474
    %v476 = vpop.f32.mrb[0].mxu0
    %477 = vdwg.mxu0
    %v478 = vlaneseq
    %v479 = vand.u32 %v478, 127
    %vm480 = vcmp.lt.s32.totalorder %v479, 0
    %v481 = vsub.s32 0, %v479
    %v482 = vsel %vm480, %v481, %v479
    %v483 = vshrl.u32 %v482, 5
    %v484 = vand.u32 %v482, 31
    %v485 = vsub.s32 0, %v484
    %v486 = vsel %vm480, %v485, %v484
    %vm487 = vcmp.ne.s32.totalorder %v486, 0
    %vm488 = vcmp.lt.s32.totalorder %v486, 0
    %vm489 = vmand %vm488, %vm487
    %v490 = vadd.s32 %v486, 32
    %v491 = vsel %vm489, %v490, %v486
    %vm492 = vcmp.eq.s32.totalorder %v491, 0
    %v493 = vand.u32 2147483647, %v475
    %vm494 = vcmp.le.f32.partialorder %v493, 0.7853982
    %vm495 = vcmp.lt.s32.totalorder %v475, 0
    %v496 = vand.u32 %v475, 2139095040
    %v497 = vshrl.u32 %v496, 23
    %v498 = vsub.s32 %v497, 127
    %v499 = vand.u32 2147483647, %v475
    %v500 = vand.u32 %v499, 8388607
    %v501 = vor.u32 %v500, 8388608
    %v502 = vsub.s32 0, %v501
    %v503 = vadd.s32 %v498, 1
    %vm504 = vcmp.gt.s32.totalorder %v503, 0
    %v505 = vsel %vm504, %v503, 0
    %v506 = vshrl.u32 %v505, 5
    %v507 = vand.u32 %v505, 31
    %v508 = vsub.s32 32, %v507
    %v509 = vshrl.u32 683565275, %v508
    %v510 = vshll.u32 683565275, %v507
    %v511 = vshrl.u32 2475754826, %v508
    %v512 = vor.u32 %v510, %v511
    %v513 = vshll.u32 2475754826, %v507
    %v514 = vshrl.u32 2131351028, %v508
    %v515 = vor.u32 %v513, %v514
    %v516 = vshll.u32 2131351028, %v507
    %v517 = vshrl.u32 2102212464, %v508
    %v518 = vor.u32 %v516, %v517
    %v519 = vshll.u32 2102212464, %v507
    %v520 = vshrl.u32 920167782, %v508
    %v521 = vor.u32 %v519, %v520
    %v522 = vshll.u32 920167782, %v507
    %v523 = vshrl.u32 1326507024, %v508
    %v524 = vor.u32 %v522, %v523
    %vm525 = vcmp.lt.s32.totalorder %v506, 1
    %vm526 = vcmp.lt.s32.totalorder %v506, 2
    %vm527 = vcmp.lt.s32.totalorder %v506, 3
    %vm528 = vcmp.lt.s32.totalorder %v506, 4
    %v529 = vsel %vm525, %v509, %v512
    %v530 = vsel %vm528, %v518, 2102212464
    %v531 = vsel %vm527, %v515, %v530
    %v532 = vsel %vm526, %v529, %v531
    %v533 = vsel %vm525, %v512, %v515
    %v534 = vsel %vm528, %v521, 920167782
    %v535 = vsel %vm527, %v518, %v534
    %v536 = vsel %vm526, %v533, %v535
    %v537 = vsel %vm525, %v515, %v518
    %v538 = vsel %vm528, %v524, 1326507024
    %v539 = vsel %vm527, %v521, %v538
    %v540 = vsel %vm526, %v537, %v539
    %v541 = vshll.u32 %v501, 8
    %v542 = vmul.u32.u64.compose %v541, %v540
    %v543 = vextract.low.u32 %v542
    %v544 = vextract.high.u32 %v542
    %v545 = vmul.u32.u64.compose %v541, %v536
    %v546 = vextract.low.u32 %v545
    %v547 = vextract.high.u32 %v545
    %v548 = vmul.u32 %v541, %v532
    %v549 = vadd.s32 %v544, %v546
    %vm550 = vc.u32 %v544, %v546
    %v551 = vadd.s32 %v547, 1
    %v552 = vsel %vm550, %v551, %v547
    %v553 = vadd.s32 %v548, %v552
    %v554 = vadd.s32 %v553, 536870912
    %v555 = vshrl.u32 %v554, 30
    %v556 = vshll.u32 %v555, 30
    %v557 = vsub.s32 %v553, %v556
    %vm558 = vcmp.lt.s32.totalorder %v557, 0
    %v559 = vsub.s32 0, %v557
    %v560 = vsel %vm558, %v559, %v557
    %v561 = vclz %v560
    %v562 = vsub.s32 %v561, 2
    %vm563 = vcmp.gt.s32.totalorder 0, %v562
    %v564 = vsel %vm563, 0, %v562
    %v565 = vsub.s32 32, %v564
    %v566 = vshll.u32 %v557, %v564
    %v567 = vshrl.u32 %v549, %v565
    %v568 = vor.u32 %v566, %v567
    %v569 = vsub.s32 4294967266, %v564
    %v570 = vadd.s32 %v569, 127
    %v571 = vshll.u32 %v570, 23
    %v572 = vor.u32 4788187, %v571
    %v573 = vand.u32 2147483647, %v572
    %v575 = vcvt.s32.f32 %v568
    %v576 = vmul.f32 %v575, %v573
    %v577 = vxor.u32 %v576, 2147483648
    %v578 = vsel %vm495, %v577, %v576
    %v579 = vsub.s32 4, %v555
    %v580 = vsel %vm495, %v579, %v555
    %v581 = vsel %vm494, %v475, %v578
    %v582 = vsel %vm494, 0, %v580
    %v583 = vcosq.f32.pop %v581
    %v584 = vsinq.f32.pop %v581
    %vm585 = vweird.f32 %v475
    %v586 = vadd.s32 %v582, 3
    %v587 = vand.u32 %v586, 3
    %vm588 = vcmp.lt.s32.totalorder %v587, 2
    %vm589 = vcmp.eq.s32.totalorder %v587, 0
    %v590 = vxor.u32 %v584, 2147483648
    %v591 = vsel %vm589, %v583, %v590
    %vm592 = vcmp.eq.s32.totalorder %v587, 2
    %v593 = vxor.u32 %v583, 2147483648
    %v594 = vsel %vm592, %v593, %v584
    %v595 = vsel %vm588, %v591, %v594
    %v596 = vsel %vm585, nan, %v595
    %v597 = vsel %vm492, %v475, %v596
    %598 = vst [vmem:[#allocation2] sm:$0xff] %v597
    // Predicated region
    $region14: #{tpu_custom_call.1} parent=1 // pred_check
      _
    $region15: #{tpu_custom_call.1} parent=1 // pred_check_branch
      %600 = sbr.rel (0) target = $region17
    $region16: #{tpu_custom_call.1} parent=1 // pred_region
      %s602 = ssub.s32 128, 128
      %603 = vsyncadd [#allocation3], %s602
      %s605 = sshll.u32 [#allocation2], 4
      %s606 = int_to_ptr.vmem [resolvable:$true] %s605
      %608 = dma.vmem_to_hbm [thread:$0]  %s606, 128, %s3, [#allocation3]
    $region17: #{tpu_custom_call.1} parent=1 // pred_fallthru
      _
    // Predicated region
    $region18: #{tpu_custom_call.1} parent=1 // pred_check
      _
    $region19: #{tpu_custom_call.1} parent=1 // pred_check_branch
      %610 = sbr.rel (0) target = $region21
    $region20: #{tpu_custom_call.1} parent=1 // pred_region
      %611 = dma.done [#allocation3], 128
    $region21: #{tpu_custom_call.1} parent=1 // pred_fallthru
      _
    %612 = vsyncpa [#allocation3], 1

</llo_original>
